<compile_context>
chip_gen: v6e
topology: v6e:2x2x1
jax: 0.10.0
libtpu: 0.0.40
codegen_flags: <defaults>
</compile_context>

<pallas_src>
import functools

import jax
import jax.numpy as jnp
from jax.experimental import pallas as pl
from jax.experimental.pallas import tpu as pltpu


def _round_up(x, m):
    return (x + m - 1) // m * m


def _tile_vmem_bytes(bb, H, C, x_isz, w_isz, logits_isz):
    """Approximate per-step VMEM footprint of the chosen tiling."""
    return (2 * bb * H * x_isz          # features tile (double-buffered)
            + 2 * bb * 4                # labels tile  (double-buffered)
            + H * C * w_isz             # weight (resident, single-buffered)
            + C * 4                     # bias   (resident)
            + 2 * bb * C * logits_isz   # logits tile (double-buffered)
            + 2 * bb * 4)               # per-row NLL tile


def hugmodel_kernel(x_ref, w_ref, b_ref, lab_ref, logits_ref, nll_ref,
                    *, true_b, num_classes, block_b, mxu_dtype):
    """One batch tile: linear layer + per-row cross-entropy partials.

    x_ref:      (TB, H)  input dtype   features tile
    w_ref:      (H,  C)  input dtype   resident weight
    b_ref:      (1,  C)  f32           resident bias
    lab_ref:    (TB, 1)  int32         labels tile (-1 / out-of-range = ignore)
    logits_ref: (TB, C)  logits_dtype  logits tile (output)
    nll_ref:    (TB, 1)  f32           per-row NLL partials (output)
    """
    i = pl.program_id(0)

    # net.forward(features): linear layer on the MXU.
    # Cast to bf16 on the VMEM tile (no padded bf16 copy in HBM), f32 accum.
    x = x_ref[...].astype(mxu_dtype)
    w = w_ref[...].astype(mxu_dtype)
    logits = jnp.dot(x, w, preferred_element_type=jnp.float32) + b_ref[...]
    logits_ref[...] = logits.astype(logits_ref.dtype)

    # loss_fn(logits, labels): numerically stable cross-entropy, all in f32.
    # nll = logsumexp(logits) - logits[label]
    m = jnp.max(logits, axis=-1, keepdims=True)                       # (TB,1)
    lse = m + jnp.log(jnp.sum(jnp.exp(logits - m), axis=-1, keepdims=True))

    labels = lab_ref[...]                                             # (TB,1)
    class_ids = jax.lax.broadcasted_iota(jnp.int32, logits.shape, 1)  # (TB,C)
    logit_at_label = jnp.sum(
        jnp.where(class_ids == labels, logits, 0.0), axis=-1, keepdims=True)

    nll = lse - logit_at_label                                        # (TB,1)

    # Mask padded rows (ragged last tile) and ignored / out-of-range labels.
    row_ids = i * block_b + jax.lax.broadcasted_iota(jnp.int32, nll.shape, 0)
    valid = (row_ids < true_b) & (labels >= 0) & (labels < num_classes)
    nll_ref[...] = jnp.where(valid, nll, 0.0)


def hugmodel_forward(features, labels, weight, bias, num_classes, *,
                     block_b=512,
                     mxu_dtype=jnp.bfloat16,
                     logits_dtype=jnp.bfloat16,
                     vmem_budget_bytes=40 * 1024 * 1024):
    """Returns {'logits': (B, C), 'loss': scalar} mimicking HugModel.forward."""
    B, H = features.shape
    C = num_classes
    assert weight.shape == (H, C)

    x_isz = jnp.dtype(features.dtype).itemsize
    w_isz = jnp.dtype(weight.dtype).itemsize
    l_isz = jnp.dtype(logits_dtype).itemsize

    # --- choose batch tile --------------------------------------------------
    if B <= 16:
        bb = B                                   # single full-extent tile
    else:
        # >=2 grid steps (v7x megacore), multiple of 16 (bf16 sublane packing).
        bb = min(block_b, _round_up(pl.cdiv(B, 2), 16))
        bb = max(16, (bb // 16) * 16)
    # Shrink tile until it fits the per-generation VMEM budget.
    while bb > 16 and _tile_vmem_bytes(bb, H, C, x_isz, w_isz, l_isz) > vmem_budget_bytes:
        bb = max(16, ((bb // 2) // 16) * 16)

    Bp = _round_up(B, bb)
    G = Bp // bb

    # --- operands (no pad/cast copies unless the batch is ragged) -----------
    lab = labels.astype(jnp.int32).reshape(B, 1)
    x = features
    if Bp != B:
        x = jnp.zeros((Bp, H), features.dtype).at[:B].set(features)
        lab = jnp.full((Bp, 1), -1, jnp.int32).at[:B].set(lab)   # -1 => ignored
    b2 = bias.astype(jnp.float32).reshape(1, C)

    vmem_est = _tile_vmem_bytes(bb, H, C, x_isz, w_isz, l_isz)
    vmem_limit = int(min(max(vmem_est + (8 << 20), 32 << 20), 56 << 20))

    cost = pl.CostEstimate(
        flops=2 * Bp * H * C + 8 * Bp * C,
        transcendentals=Bp * C + Bp,
        bytes_accessed=(Bp * H * x_isz + H * C * w_isz + C * 4 + Bp * 4
                        + Bp * C * l_isz + Bp * 4),
    )

    kernel = functools.partial(hugmodel_kernel, true_b=B, num_classes=C,
                               block_b=bb, mxu_dtype=mxu_dtype)

    logits_p, nll_rows = pl.pallas_call(
        kernel,
        out_shape=(
            jax.ShapeDtypeStruct((Bp, C), logits_dtype),   # logits
            jax.ShapeDtypeStruct((Bp, 1), jnp.float32),    # per-row NLL partials
        ),
        grid=(G,),
        in_specs=[
            # features: batch-tiled, full hidden extent.
            pl.BlockSpec((bb, H), lambda i: (i, 0)),
            # weight/bias: resident, constant block index -> single-buffered.
            pl.BlockSpec((H, C), lambda i: (0, 0), pipeline_mode=pl.Buffered(1)),
            pl.BlockSpec((1, C), lambda i: (0, 0), pipeline_mode=pl.Buffered(1)),
            # labels: batch-tiled.
            pl.BlockSpec((bb, 1), lambda i: (i, 0)),
        ],
        out_specs=(
            pl.BlockSpec((bb, C), lambda i: (i, 0)),
            pl.BlockSpec((bb, 1), lambda i: (i, 0)),
        ),
        compiler_params=pltpu.CompilerParams(
            dimension_semantics=("parallel",),             # no carried state
            vmem_limit_bytes=vmem_limit,
        ),
        cost_estimate=cost,
    )(x, weight, b2, lab)

    logits = logits_p[:B] if Bp != B else logits_p

    # Mean over valid (non-ignored) labels, matching torch CE with ignore_index.
    valid = (labels >= 0) & (labels < C)
    n_valid = jnp.maximum(jnp.sum(valid.astype(jnp.float32)), 1.0)
    loss = jnp.sum(nll_rows) / n_valid                     # tiny final reduce in XLA
    return {"logits": logits, "loss": loss}


if __name__ == "__main__":
    # Small shapes consistent with the module's generic features/labels batch.
    B, H, C = 8, 32, 16

    key = jax.random.PRNGKey(0)
    k_feat, k_lab, k_w, k_b = jax.random.split(key, 4)

    features = jax.random.normal(k_feat, (B, H), dtype=jnp.float32)
    labels = jax.random.randint(k_lab, (B,), 0, C, dtype=jnp.int32)

    # Deterministic parameter init for the synthetic Linear "net".
    weight = jax.random.normal(k_w, (H, C), dtype=jnp.float32) * (1.0 / jnp.sqrt(H))
    bias = jax.random.normal(k_b, (C,), dtype=jnp.float32) * 0.01

    out = hugmodel_forward(features, labels, weight, bias, C)
    out = jax.block_until_ready(out)

    # Reference with the same bf16-operand / f32-accumulate matmul precision.
    ref_logits = jnp.dot(features.astype(jnp.bfloat16), weight.astype(jnp.bfloat16),
                         preferred_element_type=jnp.float32) + bias
    ref_logp = jax.nn.log_softmax(ref_logits, axis=-1)
    ref_loss = -jnp.mean(
        jnp.take_along_axis(ref_logp, labels[:, None], axis=-1)[:, 0])

    assert out["logits"].shape == (B, C)
    # Logits are stored in bf16 (perf): compare with bf16-level tolerance.
    assert jnp.allclose(out["logits"].astype(jnp.float32), ref_logits,
                        atol=3e-2, rtol=3e-2)
    # Loss is computed from the f32 logits inside the kernel.
    assert jnp.allclose(out["loss"], ref_loss, atol=1e-3, rtol=1e-3)

    print("KERNEL_OK")
</pallas_src>

<mosaic_0001>
module attributes {stable_mosaic.version = 11 : i64} {
  func.func @hugmodel_kernel(%arg0: i32, %arg1: memref<8x32xf32, #tpu.memory_space<vmem>>, %arg2: memref<32x16xf32, #tpu.memory_space<vmem>>, %arg3: memref<1x16xf32, #tpu.memory_space<vmem>>, %arg4: memref<8x1xi32, #tpu.memory_space<vmem>>, %arg5: memref<8x16xbf16, #tpu.memory_space<vmem>>, %arg6: memref<8x1xf32, #tpu.memory_space<vmem>>) attributes {dimension_semantics = [#tpu.dimension_semantics<parallel>], iteration_bounds = array<i64: 1>, scalar_prefetch = 0 : i64, scratch_operands = 0 : i64, tpu.core_type = #tpu.core_type<tc>, window_params = [{transform_indices = @transform_0, window_bounds = array<i64: 8, 32>}, {pipeline_mode = #tpu.pipeline_mode<synchronous>, transform_indices = @transform_1, window_bounds = array<i64: 32, 16>}, {pipeline_mode = #tpu.pipeline_mode<synchronous>, transform_indices = @transform_2, window_bounds = array<i64: 1, 16>}, {transform_indices = @transform_3, window_bounds = array<i64: 8, 1>}, {transform_indices = @transform_4, window_bounds = array<i64: 8, 16>}, {transform_indices = @transform_5, window_bounds = array<i64: 8, 1>}]} {
    %c0 = arith.constant 0 : index
    %c0_0 = arith.constant 0 : index
    %0 = vector.load %arg1[%c0, %c0_0] : memref<8x32xf32, #tpu.memory_space<vmem>>, vector<8x32xf32>
    %1 = arith.truncf %0 : vector<8x32xf32> to vector<8x32xbf16>
    %c0_1 = arith.constant 0 : index
    %c0_2 = arith.constant 0 : index
    %2 = vector.load %arg2[%c0_1, %c0_2] : memref<32x16xf32, #tpu.memory_space<vmem>>, vector<32x16xf32>
    %3 = arith.truncf %2 : vector<32x16xf32> to vector<32x16xbf16>
    %cst = arith.constant dense<0.000000e+00> : vector<8x16xf32>
    %4 = tpu.matmul %1, %3, %cst {dimension_numbers = #tpu.dot_dimension_numbers<[1], [0], [0], [1], [0, 0, 1, 1], [], []>} : vector<8x32xbf16>, vector<32x16xbf16>, vector<8x16xf32> -> vector<8x16xf32>
    %c0_3 = arith.constant 0 : index
    %c0_4 = arith.constant 0 : index
    %5 = vector.load %arg3[%c0_3, %c0_4] : memref<1x16xf32, #tpu.memory_space<vmem>>, vector<1x16xf32>
    %6 = vector.broadcast %5 : vector<1x16xf32> to vector<8x16xf32>
    %7 = arith.addf %4, %6 : vector<8x16xf32>
    %8 = arith.truncf %7 : vector<8x16xf32> to vector<8x16xbf16>
    %c0_5 = arith.constant 0 : index
    %c0_6 = arith.constant 0 : index
    %9 = vector.load %arg5[%c0_5, %c0_6] : memref<8x16xbf16, #tpu.memory_space<vmem>>, vector<8x16xbf16>
    tpu.vector_store %arg5[%c0_5, %c0_6], %8 {strides = array<i32>} : memref<8x16xbf16, #tpu.memory_space<vmem>>, vector<8x16xbf16>,
    %cst_7 = arith.constant dense<0xFF800000> : vector<8xf32>
    %10 = vector.multi_reduction <maximumf>, %7, %cst_7 [1] : vector<8x16xf32> to vector<8xf32>
    %11 = vector.shape_cast %10 : vector<8xf32> to vector<8x1xf32>
    %12 = vector.broadcast %11 : vector<8x1xf32> to vector<8x16xf32>
    %13 = arith.subf %7, %12 : vector<8x16xf32>
    %14 = math.exp %13 : vector<8x16xf32>
    %cst_8 = arith.constant dense<0.000000e+00> : vector<8xf32>
    %15 = vector.multi_reduction <add>, %14, %cst_8 [1] : vector<8x16xf32> to vector<8xf32>
    %16 = vector.shape_cast %15 : vector<8xf32> to vector<8x1xf32>
    %17 = math.log %16 : vector<8x1xf32>
    %18 = arith.addf %11, %17 : vector<8x1xf32>
    %c0_9 = arith.constant 0 : index
    %c0_10 = arith.constant 0 : index
    %19 = vector.load %arg4[%c0_9, %c0_10] : memref<8x1xi32, #tpu.memory_space<vmem>>, vector<8x1xi32>
    %20 = tpu.iota {dimensions = array<i32: 1>} : vector<8x16xi32>
    %21 = vector.broadcast %19 : vector<8x1xi32> to vector<8x16xi32>
    %22 = arith.cmpi eq, %20, %21 : vector<8x16xi32>
    %cst_11 = arith.constant 0.000000e+00 : f32
    %23 = vector.broadcast %cst_11 : f32 to vector<8x16xf32>
    %24 = arith.select %22, %7, %23 : vector<8x16xi1>, vector<8x16xf32>
    %cst_12 = arith.constant dense<0.000000e+00> : vector<8xf32>
    %25 = vector.multi_reduction <add>, %24, %cst_12 [1] : vector<8x16xf32> to vector<8xf32>
    %26 = vector.shape_cast %25 : vector<8xf32> to vector<8x1xf32>
    %27 = arith.subf %18, %26 : vector<8x1xf32>
    %c8_i32 = arith.constant 8 : i32
    %28 = arith.muli %arg0, %c8_i32 : i32
    %29 = tpu.iota {dimensions = array<i32: 0>} : vector<8x1xi32>
    %30 = vector.broadcast %28 : i32 to vector<8x1xi32>
    %31 = arith.addi %30, %29 : vector<8x1xi32>
    %c8_i32_13 = arith.constant 8 : i32
    %32 = vector.broadcast %c8_i32_13 : i32 to vector<8x1xi32>
    %33 = arith.cmpi slt, %31, %32 : vector<8x1xi32>
    %c0_i32 = arith.constant 0 : i32
    %34 = vector.broadcast %c0_i32 : i32 to vector<8x1xi32>
    %35 = arith.cmpi sge, %19, %34 : vector<8x1xi32>
    %36 = arith.andi %33, %35 : vector<8x1xi1>
    %c16_i32 = arith.constant 16 : i32
    %37 = vector.broadcast %c16_i32 : i32 to vector<8x1xi32>
    %38 = arith.cmpi slt, %19, %37 : vector<8x1xi32>
    %39 = arith.andi %36, %38 : vector<8x1xi1>
    %cst_14 = arith.constant 0.000000e+00 : f32
    %40 = vector.broadcast %cst_14 : f32 to vector<8x1xf32>
    %41 = arith.select %39, %27, %40 : vector<8x1xi1>, vector<8x1xf32>
    %c0_15 = arith.constant 0 : index
    %c0_16 = arith.constant 0 : index
    %42 = vector.load %arg6[%c0_15, %c0_16] : memref<8x1xf32, #tpu.memory_space<vmem>>, vector<8x1xf32>
    tpu.vector_store %arg6[%c0_15, %c0_16], %41 {strides = array<i32>} : memref<8x1xf32, #tpu.memory_space<vmem>>, vector<8x1xf32>,
    return
  }
  func.func @transform_0(%arg0: i32) -> (i32, i32) {
    %c0_i32 = arith.constant 0 : i32
    %c0_i32_0 = arith.constant 0 : i32
    return %arg0, %c0_i32 : i32, i32
  }
  func.func @transform_1(%arg0: i32) -> (i32, i32) {
    %c0_i32 = arith.constant 0 : i32
    %c0_i32_0 = arith.constant 0 : i32
    %c0_i32_1 = arith.constant 0 : i32
    return %c0_i32, %c0_i32_0 : i32, i32
  }
  func.func @transform_2(%arg0: i32) -> (i32, i32) {
    %c0_i32 = arith.constant 0 : i32
    %c0_i32_0 = arith.constant 0 : i32
    %c0_i32_1 = arith.constant 0 : i32
    return %c0_i32, %c0_i32_0 : i32, i32
  }
  func.func @transform_3(%arg0: i32) -> (i32, i32) {
    %c0_i32 = arith.constant 0 : i32
    %c0_i32_0 = arith.constant 0 : i32
    return %arg0, %c0_i32 : i32, i32
  }
  func.func @transform_4(%arg0: i32) -> (i32, i32) {
    %c0_i32 = arith.constant 0 : i32
    %c0_i32_0 = arith.constant 0 : i32
    return %arg0, %c0_i32 : i32, i32
  }
  func.func @transform_5(%arg0: i32) -> (i32, i32) {
    %c0_i32 = arith.constant 0 : i32
    %c0_i32_0 = arith.constant 0 : i32
    return %arg0, %c0_i32 : i32, i32
  }
}

</mosaic_0001>

<llo_original>
// kernel: tpu_custom_call.1
$region0: #{tpu_custom_call.1}
  #allocation0 [shape = 'u32[]', space=smem, size = 0x4, offset = 0x4, fixed_abs, tag = 'smem constant byte address 0x4 - core index']
  #allocation1 [shape = 'u32[144,128]{1,0:T(1,128)}', space=vmem, size = 0x12000, scoped, tag = 'internal scratch']
  %s0 = inlined_call_operand.vmem [shape: f32[8,32], index: 0, kind: input, shape index: {}]
  %s1 = inlined_call_operand.vmem [shape: f32[32,16], index: 1, kind: input, shape index: {}]
  %s2 = inlined_call_operand.vmem [shape: f32[1,16], index: 2, kind: input, shape index: {}]
  %s3 = inlined_call_operand.vmem [shape: s32[8,1], index: 3, kind: input, shape index: {}]
  %s4 = inlined_call_operand.hbm [shape: bf16[8,16], index: 4, kind: output, shape index: {0}]
  %s5 = inlined_call_operand.vmem [shape: f32[8,1], index: 5, kind: output, shape index: {1}]
  %6 = xla_tuple %s4, %s5
  %s7 = sld [smem:[#allocation0]]
  $region34: #{tpu_custom_call.1} parent=0
    _
  %s9 = ssub.s32 1, %s7
  %s10 = scalar_select 0, %s9, %s7
  $region1: #{tpu_custom_call.1} parent=0
    #allocation2 [shape = 'u8[2048]{0}', space=vmem, size = 0x800, scoped, tag = 'output window, operand 0, single buffered']
    #allocation3 [shape = 's32[1]{0}', space=sflag, size = 0x4, scoped, tag = 'scoped memory for tpu_custom_call.1']
    %11 = vsyncpa [#allocation3], 0
    // Predicated region
    $region2: #{tpu_custom_call.1} parent=1 // pred_check
      _
    $region3: #{tpu_custom_call.1} parent=1 // pred_check_branch
      %13 = sbr.rel (0) target = $region5
    $region4: #{tpu_custom_call.1} parent=1 // pred_region
      _
    $region5: #{tpu_custom_call.1} parent=1 // pred_fallthru
      _
    // Predicated region
    $region6: #{tpu_custom_call.1} parent=1 // pred_check
      _
    $region7: #{tpu_custom_call.1} parent=1 // pred_check_branch
      %15 = sbr.rel (0) target = $region9
    $region8: #{tpu_custom_call.1} parent=1 // pred_region
      _
    $region9: #{tpu_custom_call.1} parent=1 // pred_fallthru
      _
    // Predicated region
    $region10: #{tpu_custom_call.1} parent=1 // pred_check
      _
    $region11: #{tpu_custom_call.1} parent=1 // pred_check_branch
      %17 = sbr.rel (0) target = $region13
    $region12: #{tpu_custom_call.1} parent=1 // pred_region
      _
    $region13: #{tpu_custom_call.1} parent=1 // pred_fallthru
      _
    // Predicated region
    $region14: #{tpu_custom_call.1} parent=1 // pred_check
      _
    $region15: #{tpu_custom_call.1} parent=1 // pred_check_branch
      %19 = sbr.rel (0) target = $region17
    $region16: #{tpu_custom_call.1} parent=1 // pred_region
      _
    $region17: #{tpu_custom_call.1} parent=1 // pred_fallthru
      _
    %v21 = vld [vmem:[%s0] sm:$0xff]
    %v22 = vpack.c.bf16 %v21, %v21
    %v23 = vld [vmem:[%s1] sm:$0xff]
    %v24 = vld [vmem:[%s1 + $0x8] sm:$0xff]
    %v25 = vld [vmem:[%s1 + $0x10] sm:$0xff]
    %v26 = vld [vmem:[%s1 + $0x18] sm:$0xff]
    %v27 = vpack.c.bf16 %v24, %v23
    %v28 = vpack.c.bf16 %v26, %v25
    %v29 = vld [vmem:[%s2] sm:$0x1]
    %v31 = vlaneseq
    %v32 = vshrl.u32 %v31, 7
    %v33 = vsub.s32 0, %v32
    %v34 = vrot.slane %v29, %v33
    %vm36 = vcmask 261120
    %v38 = vsel %vm36, %v22, 0
    %40 = vmatprep.subr.bf16.mxu0 0
    %41 = vmatpush1.bf16.msra.mxu0 0
    %42 = vmatprep.subr.bf16.mxu0 0
    %43 = vmatpush1.bf16.msra.mxu0 0
    %44 = vmatprep.subr.bf16.mxu0 0
    %45 = vmatpush1.bf16.msra.mxu0 0
    %46 = vmatprep.subr.bf16.mxu0 0
    %47 = vmatpush1.bf16.msra.mxu0 0
    %48 = vmatprep.subr.bf16.mxu0 0
    %49 = vmatpush1.bf16.msra.mxu0 0
    %50 = vmatprep.subr.bf16.mxu0 0
    %51 = vmatpush1.bf16.msra.mxu0 0
    %52 = vmatprep.subr.bf16.mxu0 0
    %53 = vmatpush1.bf16.msra.mxu0 %v28
    %54 = vmatprep.subr.bf16.mxu0 0
    %55 = vmatpush1.bf16.msra.mxu0 %v27
    %56 = vmatprep.subr.bf16.mxu0 0
    %57 = vmatpush2.bf16.msra.mxu0 0
    %58 = vmatprep.subr.bf16.mxu0 0
    %59 = vmatpush2.bf16.msra.mxu0 0
    %60 = vmatprep.subr.bf16.mxu0 0
    %61 = vmatpush2.bf16.msra.mxu0 0
    %62 = vmatprep.subr.bf16.mxu0 0
    %63 = vmatpush2.bf16.msra.mxu0 0
    %64 = vmatprep.subr.bf16.mxu0 0
    %65 = vmatpush2.bf16.msra.mxu0 0
    %66 = vmatprep.subr.bf16.mxu0 0
    %67 = vmatpush2.bf16.msra.mxu0 0
    %68 = vmatprep.subr.bf16.mxu0 0
    %69 = vmatpush2.bf16.msra.mxu0 0
    %70 = vmatprep.subr.bf16.mxu0 0
    %71 = vmatpush2.bf16.msra.mxu0 0
    %72 = vmatprep.mubr.bf16.mxu0 0
    %73 = vmatmul.mubr.bf16.gmra.mxu0 %v38
    %v74 = vpop.f32.mrf.mxu0
    %v75 = vadd.f32 %v34, %v74
    %v76 = vpop.f32.mrf.mxu0
    %v77 = vpop.f32.mrf.mxu0
    %v78 = vpop.f32.mrf.mxu0
    %79 = vdwg.mxu0
    %v80 = vpack.c.bf16 %v75, %v75
    %vm81 = vcmask 125952
    %82 = vst.msk [vmem:[#allocation2] sm:$0xf] %vm81, %v80
    %vm83 = vcmask 130048
    %v84 = vsel %vm83, %v75, -inf
    %85 = vmax.xlane.f32.xlu0 %v84
    %v86 = vpop.xlane.xlu0 %85
    %v87 = vsub.f32 %v75, %v86
    %v88 = vmul.f32 %v87, 1.442695
    %v89 = vpow.pop %v88
    %v90 = vsel %vm83, %v89, 0.0
    %91 = vadd.xlane.f32.xlu0 %v90
    %v92 = vpop.xlane.xlu0 %91
    %v93 = vlog2.pop %v92
    %v94 = vmul.f32 %v93, 0.6931472
    %v95 = vadd.f32 %v86, %v94
    %v96 = vld [vmem:[%s3] sm:$0xff]
    %v97 = vlaneseq
    %v98 = vand.u32 %v97, 127
    %99 = vset.pattern.permute.xlu0 0
    %100 = vperm.xlu0 %99, %v96
    %v101 = vpop.permute.xlu0 %100
    %vm102 = vcmp.eq.s32.totalorder %v98, %v101
    %v103 = vsel %vm102, %v75, 0.0
    %v104 = vsel %vm83, %v103, 0.0
    %105 = vadd.xlane.f32.xlu0 %v104
    %v106 = vpop.xlane.xlu0 %105
    %v107 = vsub.f32 %v95, %v106
    %s108 = smul.u32 0, 8
    %v109 = vlaneseq
    %v110 = vshrl.u32 %v109, 7
    %v111 = vstv %s108
    %v112 = vadd.s32 %v111, %v110
    %vm113 = vcmp.lt.s32.totalorder %v112, 8
    %vm114 = vcmp.ge.s32.totalorder %v96, 0
    %vm115 = vmand %vm113, %vm114
    %vm116 = vcmp.lt.s32.totalorder %v96, 16
    %vm117 = vmand %vm115, %vm116
    %v118 = vsel %vm117, %v107, 0.0
    %vm119 = vcmask 7168
    %120 = vst.msk [vmem:[%s5] sm:$0xff] %vm119, %v118
    // Predicated region
    $region18: #{tpu_custom_call.1} parent=1 // pred_check
      _
    $region19: #{tpu_custom_call.1} parent=1 // pred_check_branch
      %122 = sbr.rel (0) target = $region21
    $region20: #{tpu_custom_call.1} parent=1 // pred_region
      %s124 = ssub.s32 64, 64
      %125 = vsyncadd [#allocation3], %s124
      %s127 = sshll.u32 [#allocation2], 4
      %s128 = int_to_ptr.vmem [resolvable:$true] %s127
      %130 = dma.vmem_to_hbm [thread:$0]  %s128, 64, %s4, [#allocation3]
    $region21: #{tpu_custom_call.1} parent=1 // pred_fallthru
      _
    // Predicated region
    $region22: #{tpu_custom_call.1} parent=1 // pred_check
      _
    $region23: #{tpu_custom_call.1} parent=1 // pred_check_branch
      %132 = sbr.rel (0) target = $region25
    $region24: #{tpu_custom_call.1} parent=1 // pred_region
      _
    $region25: #{tpu_custom_call.1} parent=1 // pred_fallthru
      _
    // Predicated region
    $region26: #{tpu_custom_call.1} parent=1 // pred_check
      _
    $region27: #{tpu_custom_call.1} parent=1 // pred_check_branch
      %134 = sbr.rel (0) target = $region29
    $region28: #{tpu_custom_call.1} parent=1 // pred_region
      %135 = dma.done [#allocation3], 64
    $region29: #{tpu_custom_call.1} parent=1 // pred_fallthru
      _
    // Predicated region
    $region30: #{tpu_custom_call.1} parent=1 // pred_check
      _
    $region31: #{tpu_custom_call.1} parent=1 // pred_check_branch
      %137 = sbr.rel (0) target = $region33
    $region32: #{tpu_custom_call.1} parent=1 // pred_region
      _
    $region33: #{tpu_custom_call.1} parent=1 // pred_fallthru
      _
    %138 = vsyncpa [#allocation3], 1

</llo_original>
